<compile_context>
chip_gen: v5e
topology: v5e:2x2
jax: 0.10.0
libtpu: 0.0.40
codegen_flags: <defaults>
</compile_context>

<pallas_src>
import jax
import jax.numpy as jnp
from jax.experimental import pallas as pl
from jax.experimental.pallas import tpu as pltpu


def _round_up(x, m):
    return ((x + m - 1) // m) * m


def _vqvae_var_encoder_kernel(
    feat_ref,            # (TB, R)       f32
    w1_ref, b1_ref,      # (R, H) bf16, (1, H) f32
    w2_ref, b2_ref,      # (H, H) bf16, (1, H) f32
    wh_ref, bh_ref,      # (H, HEAD_W) bf16 fused [mu | logvar | 0-pad], (1, HEAD_W) f32
    eps_ref,             # (TB, O)       f32  (unpadded noise)
    out_ref,             # (TB, OUT_W)   f32  packed [enc | mu | logvar | 0-pad]
):
    o = eps_ref.shape[-1]
    out_w = out_ref.shape[-1]

    # _fc_layers: Linear -> ReLU -> Linear -> ReLU   (normalize=False)
    h = jnp.dot(feat_ref[...].astype(jnp.bfloat16), w1_ref[...],
                preferred_element_type=jnp.float32) + b1_ref[...]
    h = jnp.maximum(h, 0.0)
    h = jnp.dot(h.astype(jnp.bfloat16), w2_ref[...],
                preferred_element_type=jnp.float32) + b2_ref[...]
    h = jnp.maximum(h, 0.0)

    # Fused mu/logvar head: single MXU pass over HEAD_W (=128 here) lanes.
    head = jnp.dot(h.astype(jnp.bfloat16), wh_ref[...],
                   preferred_element_type=jnp.float32) + bh_ref[...]
    mu = head[:, :o]
    logvar = head[:, o:2 * o]

    # std = exp(0.5 * logvar); encoding = eps * std + mu
    std = jnp.exp(0.5 * logvar)
    enc = eps_ref[...] * std + mu

    # Pack the three O-wide results into one lane-dense OUT_W block.
    parts = [enc, mu, logvar]
    pad_w = out_w - 3 * o
    if pad_w > 0:
        parts.append(jnp.zeros((enc.shape[0], pad_w), jnp.float32))
    out_ref[...] = jnp.concatenate(parts, axis=-1)


def vqvae_variational_obs_encoder(feat, params, eps, *, block_b=1024):
    """Pallas forward for the precomputed-feature path.

    feat:   (B, representation_size) float32
    params: dict of weights/biases (see init_params)
    eps:    (B, output_dim) float32 standard-normal noise (reparameterization)
    Returns (encoding, (mu, logvar)) exactly like the PyTorch module.
    """
    feat = jnp.asarray(feat, jnp.float32)
    eps = jnp.asarray(eps, jnp.float32)
    B, R = feat.shape
    H = params["w1"].shape[1]
    O = params["w_mu"].shape[1]

    HEAD_W = max(128, _round_up(2 * O, 128))   # fused-head lane width
    OUT_W = max(128, _round_up(3 * O, 128))    # packed output lane width

    # bf16 weights (half the HBM bytes, 2x MXU rate); biases & accum stay f32.
    w1 = params["w1"].astype(jnp.bfloat16)
    w2 = params["w2"].astype(jnp.bfloat16)
    b1 = params["b1"].astype(jnp.float32).reshape(1, H)
    b2 = params["b2"].astype(jnp.float32).reshape(1, H)

    def pad_cols(w, width):
        return jnp.zeros((w.shape[0], width), w.dtype).at[:, : w.shape[1]].set(w)

    # Fuse mu & logvar heads: concatenate the 2*O real columns, THEN pad to HEAD_W.
    w_head = pad_cols(
        jnp.concatenate([params["w_mu"], params["w_lv"]], axis=1), HEAD_W
    ).astype(jnp.bfloat16)
    b_head = pad_cols(
        jnp.concatenate(
            [params["b_mu"].reshape(1, O), params["b_lv"].reshape(1, O)], axis=1
        ),
        HEAD_W,
    ).astype(jnp.float32)

    # Batch tiling. Aim for >= 2 grid blocks (v7x has 2 TensorCores) whenever
    # the batch is bigger than one minimal 8-row tile; cap at block_b.
    if B > 8:
        TB = min(block_b, _round_up(pl.cdiv(B, 2), 8))
    else:
        TB = min(block_b, _round_up(max(B, 1), 8))
    n_blocks = pl.cdiv(B, TB)
    B_pad = n_blocks * TB

    if B_pad == B:
        feat_p, eps_p = feat, eps
    else:
        feat_p = jnp.zeros((B_pad, R), jnp.float32).at[:B].set(feat)
        eps_p = jnp.zeros((B_pad, O), jnp.float32).at[:B].set(eps)

    grid_spec = pltpu.PrefetchScalarGridSpec(
        num_scalar_prefetch=0,
        grid=(n_blocks,),
        in_specs=[
            pl.BlockSpec((TB, R), lambda i: (i, 0)),        # feat tile (pipelined)
            pl.BlockSpec((R, H), lambda i: (0, 0)),         # w1   (resident)
            pl.BlockSpec((1, H), lambda i: (0, 0)),         # b1   (resident)
            pl.BlockSpec((H, H), lambda i: (0, 0)),         # w2   (resident)
            pl.BlockSpec((1, H), lambda i: (0, 0)),         # b2   (resident)
            pl.BlockSpec((H, HEAD_W), lambda i: (0, 0)),    # fused head weight
            pl.BlockSpec((1, HEAD_W), lambda i: (0, 0)),    # fused head bias
            pl.BlockSpec((TB, O), lambda i: (i, 0)),        # eps tile (unpadded)
        ],
        out_specs=pl.BlockSpec((TB, OUT_W), lambda i: (i, 0)),  # packed output
    )

    weight_bytes = (w1.size + w2.size + w_head.size) * 2 \
                 + (b1.size + b2.size + b_head.size) * 4
    io_bytes = (feat_p.size + eps_p.size + B_pad * OUT_W) * 4
    cost = pl.CostEstimate(
        flops=2 * B_pad * (R * H + H * H + H * HEAD_W),
        transcendentals=B_pad * O,
        bytes_accessed=weight_bytes + io_bytes,
    )

    out_p = pl.pallas_call(
        _vqvae_var_encoder_kernel,
        out_shape=jax.ShapeDtypeStruct((B_pad, OUT_W), jnp.float32),
        grid_spec=grid_spec,
        compiler_params=pltpu.CompilerParams(
            dimension_semantics=("parallel",),   # megacore sharding on v7x
        ),
        cost_estimate=cost,
    )(feat_p, w1, b1, w2, b2, w_head, b_head, eps_p)

    enc = out_p[:B, :O]
    mu = out_p[:B, O:2 * O]
    logvar = out_p[:B, 2 * O:3 * O]
    return enc, (mu, logvar)


def init_params(key, representation_size, fc_hidden_dim, output_dim):
    """Deterministic synthetic parameter init (stands in for _init_weights)."""
    ks = jax.random.split(key, 8)
    s = 0.05
    return {
        "w1":   s * jax.random.normal(ks[0], (representation_size, fc_hidden_dim), jnp.float32),
        "b1":   s * jax.random.normal(ks[1], (1, fc_hidden_dim), jnp.float32),
        "w2":   s * jax.random.normal(ks[2], (fc_hidden_dim, fc_hidden_dim), jnp.float32),
        "b2":   s * jax.random.normal(ks[3], (1, fc_hidden_dim), jnp.float32),
        "w_mu": s * jax.random.normal(ks[4], (fc_hidden_dim, output_dim), jnp.float32),
        "b_mu": s * jax.random.normal(ks[5], (1, output_dim), jnp.float32),
        "w_lv": s * jax.random.normal(ks[6], (fc_hidden_dim, output_dim), jnp.float32),
        "b_lv": s * jax.random.normal(ks[7], (1, output_dim), jnp.float32),
    }


def reference_forward_f32(feat, params, eps):
    """Plain-JAX f32 reference matching the PyTorch forward (feature path)."""
    h = jnp.maximum(feat @ params["w1"] + params["b1"], 0.0)
    h = jnp.maximum(h @ params["w2"] + params["b2"], 0.0)
    mu = h @ params["w_mu"] + params["b_mu"]
    logvar = h @ params["w_lv"] + params["b_lv"]
    std = jnp.exp(0.5 * logvar)
    return eps * std + mu, (mu, logvar)


def reference_forward_bf16w(feat, params, eps):
    """Same math as the kernel: bf16 weights/act casts, f32 MXU accumulation."""
    bf = jnp.bfloat16

    def mm(x, w):
        return jnp.dot(x.astype(bf), w.astype(bf), preferred_element_type=jnp.float32)

    h = jnp.maximum(mm(feat, params["w1"]) + params["b1"], 0.0)
    h = jnp.maximum(mm(h, params["w2"]) + params["b2"], 0.0)
    mu = mm(h, params["w_mu"]) + params["b_mu"]
    logvar = mm(h, params["w_lv"]) + params["b_lv"]
    std = jnp.exp(0.5 * logvar)
    return eps * std + mu, (mu, logvar)


if __name__ == "__main__":
    # Small latency-smoke-test shapes consistent with the module:
    #   batch=8, vqvae.representation_size=128, fc_hidden_dim=128,
    #   fc_n_hidden=2, output_dim=32, normalize=False, fixed=True.
    # (Tune / benchmark at production batch sizes, B in the hundreds+.)
    B, R, H, O = 8, 128, 128, 32

    key = jax.random.PRNGKey(0)
    k_feat, k_eps, k_params = jax.random.split(key, 3)

    feat = jax.random.normal(k_feat, (B, R), jnp.float32)   # precomputed VQVAE features
    eps = jax.random.normal(k_eps, (B, O), jnp.float32)     # reparameterization noise
    params = init_params(k_params, R, H, O)

    enc, (mu, logvar) = vqvae_variational_obs_encoder(feat, params, eps)
    jax.block_until_ready((enc, mu, logvar))

    # Tight check against a reference using the same bf16-weight math.
    enc_b, (mu_b, lv_b) = reference_forward_bf16w(feat, params, eps)
    assert jnp.allclose(enc, enc_b, atol=2e-3, rtol=2e-3)
    assert jnp.allclose(mu, mu_b, atol=2e-3, rtol=2e-3)
    assert jnp.allclose(logvar, lv_b, atol=2e-3, rtol=2e-3)

    # Loose sanity check against the pure-f32 PyTorch-equivalent reference
    # (tolerance relaxed because kernel uses bf16 weights for MXU/DMA savings).
    enc_r, (mu_r, lv_r) = reference_forward_f32(feat, params, eps)
    assert jnp.allclose(enc, enc_r, atol=5e-2, rtol=5e-2)
    assert jnp.allclose(mu, mu_r, atol=5e-2, rtol=5e-2)
    assert jnp.allclose(logvar, lv_r, atol=5e-2, rtol=5e-2)

    # Also exercise a multi-block grid (B > TB path, uneven tail padding).
    B2 = 200
    feat2 = jax.random.normal(jax.random.PRNGKey(1), (B2, R), jnp.float32)
    eps2 = jax.random.normal(jax.random.PRNGKey(2), (B2, O), jnp.float32)
    enc2, (mu2, lv2) = vqvae_variational_obs_encoder(feat2, params, eps2, block_b=64)
    jax.block_until_ready((enc2, mu2, lv2))
    enc2_b, (mu2_b, lv2_b) = reference_forward_bf16w(feat2, params, eps2)
    assert jnp.allclose(enc2, enc2_b, atol=2e-3, rtol=2e-3)
    assert jnp.allclose(mu2, mu2_b, atol=2e-3, rtol=2e-3)
    assert jnp.allclose(lv2, lv2_b, atol=2e-3, rtol=2e-3)

    print("KERNEL_OK")
</pallas_src>

<mosaic_0001>
module attributes {stable_mosaic.version = 11 : i64} {
  func.func @_vqvae_var_encoder_kernel(%arg0: i32, %arg1: memref<8x128xf32, #tpu.memory_space<vmem>>, %arg2: memref<128x128xbf16, #tpu.memory_space<vmem>>, %arg3: memref<1x128xf32, #tpu.memory_space<vmem>>, %arg4: memref<128x128xbf16, #tpu.memory_space<vmem>>, %arg5: memref<1x128xf32, #tpu.memory_space<vmem>>, %arg6: memref<128x128xbf16, #tpu.memory_space<vmem>>, %arg7: memref<1x128xf32, #tpu.memory_space<vmem>>, %arg8: memref<8x32xf32, #tpu.memory_space<vmem>>, %arg9: memref<8x128xf32, #tpu.memory_space<vmem>>) attributes {dimension_semantics = [#tpu.dimension_semantics<parallel>], iteration_bounds = array<i64: 1>, scalar_prefetch = 0 : i64, scratch_operands = 0 : i64, tpu.core_type = #tpu.core_type<tc>, window_params = [{transform_indices = @transform_0, window_bounds = array<i64: 8, 128>}, {pipeline_mode = #tpu.pipeline_mode<synchronous>, transform_indices = @transform_1, window_bounds = array<i64: 128, 128>}, {pipeline_mode = #tpu.pipeline_mode<synchronous>, transform_indices = @transform_2, window_bounds = array<i64: 1, 128>}, {pipeline_mode = #tpu.pipeline_mode<synchronous>, transform_indices = @transform_3, window_bounds = array<i64: 128, 128>}, {pipeline_mode = #tpu.pipeline_mode<synchronous>, transform_indices = @transform_4, window_bounds = array<i64: 1, 128>}, {pipeline_mode = #tpu.pipeline_mode<synchronous>, transform_indices = @transform_5, window_bounds = array<i64: 128, 128>}, {pipeline_mode = #tpu.pipeline_mode<synchronous>, transform_indices = @transform_6, window_bounds = array<i64: 1, 128>}, {transform_indices = @transform_7, window_bounds = array<i64: 8, 32>}, {transform_indices = @transform_8, window_bounds = array<i64: 8, 128>}]} {
    %c0 = arith.constant 0 : index
    %c0_0 = arith.constant 0 : index
    %0 = vector.load %arg1[%c0, %c0_0] : memref<8x128xf32, #tpu.memory_space<vmem>>, vector<8x128xf32>
    %1 = arith.truncf %0 : vector<8x128xf32> to vector<8x128xbf16>
    %c0_1 = arith.constant 0 : index
    %c0_2 = arith.constant 0 : index
    %2 = vector.load %arg2[%c0_1, %c0_2] : memref<128x128xbf16, #tpu.memory_space<vmem>>, vector<128x128xbf16>
    %cst = arith.constant dense<0.000000e+00> : vector<8x128xf32>
    %3 = tpu.matmul %1, %2, %cst {dimension_numbers = #tpu.dot_dimension_numbers<[1], [0], [0], [1], [0, 0, 1, 1], [], []>} : vector<8x128xbf16>, vector<128x128xbf16>, vector<8x128xf32> -> vector<8x128xf32>
    %c0_3 = arith.constant 0 : index
    %c0_4 = arith.constant 0 : index
    %4 = vector.load %arg3[%c0_3, %c0_4] : memref<1x128xf32, #tpu.memory_space<vmem>>, vector<1x128xf32>
    %5 = vector.broadcast %4 : vector<1x128xf32> to vector<8x128xf32>
    %6 = arith.addf %3, %5 : vector<8x128xf32>
    %cst_5 = arith.constant 0.000000e+00 : f32
    %7 = vector.broadcast %cst_5 : f32 to vector<8x128xf32>
    %8 = arith.maximumf %6, %7 : vector<8x128xf32>
    %9 = arith.truncf %8 : vector<8x128xf32> to vector<8x128xbf16>
    %c0_6 = arith.constant 0 : index
    %c0_7 = arith.constant 0 : index
    %10 = vector.load %arg4[%c0_6, %c0_7] : memref<128x128xbf16, #tpu.memory_space<vmem>>, vector<128x128xbf16>
    %cst_8 = arith.constant dense<0.000000e+00> : vector<8x128xf32>
    %11 = tpu.matmul %9, %10, %cst_8 {dimension_numbers = #tpu.dot_dimension_numbers<[1], [0], [0], [1], [0, 0, 1, 1], [], []>} : vector<8x128xbf16>, vector<128x128xbf16>, vector<8x128xf32> -> vector<8x128xf32>
    %c0_9 = arith.constant 0 : index
    %c0_10 = arith.constant 0 : index
    %12 = vector.load %arg5[%c0_9, %c0_10] : memref<1x128xf32, #tpu.memory_space<vmem>>, vector<1x128xf32>
    %13 = vector.broadcast %12 : vector<1x128xf32> to vector<8x128xf32>
    %14 = arith.addf %11, %13 : vector<8x128xf32>
    %cst_11 = arith.constant 0.000000e+00 : f32
    %15 = vector.broadcast %cst_11 : f32 to vector<8x128xf32>
    %16 = arith.maximumf %14, %15 : vector<8x128xf32>
    %17 = arith.truncf %16 : vector<8x128xf32> to vector<8x128xbf16>
    %c0_12 = arith.constant 0 : index
    %c0_13 = arith.constant 0 : index
    %18 = vector.load %arg6[%c0_12, %c0_13] : memref<128x128xbf16, #tpu.memory_space<vmem>>, vector<128x128xbf16>
    %cst_14 = arith.constant dense<0.000000e+00> : vector<8x128xf32>
    %19 = tpu.matmul %17, %18, %cst_14 {dimension_numbers = #tpu.dot_dimension_numbers<[1], [0], [0], [1], [0, 0, 1, 1], [], []>} : vector<8x128xbf16>, vector<128x128xbf16>, vector<8x128xf32> -> vector<8x128xf32>
    %c0_15 = arith.constant 0 : index
    %c0_16 = arith.constant 0 : index
    %20 = vector.load %arg7[%c0_15, %c0_16] : memref<1x128xf32, #tpu.memory_space<vmem>>, vector<1x128xf32>
    %21 = vector.broadcast %20 : vector<1x128xf32> to vector<8x128xf32>
    %22 = arith.addf %19, %21 : vector<8x128xf32>
    %23 = vector.extract_strided_slice %22 {offsets = [0, 0], sizes = [8, 32], strides = [1, 1]} : vector<8x128xf32> to vector<8x32xf32>
    %24 = vector.extract_strided_slice %22 {offsets = [0, 32], sizes = [8, 32], strides = [1, 1]} : vector<8x128xf32> to vector<8x32xf32>
    %cst_17 = arith.constant 5.000000e-01 : f32
    %25 = vector.broadcast %cst_17 : f32 to vector<8x32xf32>
    %26 = arith.mulf %25, %24 : vector<8x32xf32>
    %27 = math.exp %26 : vector<8x32xf32>
    %c0_18 = arith.constant 0 : index
    %c0_19 = arith.constant 0 : index
    %28 = vector.load %arg8[%c0_18, %c0_19] : memref<8x32xf32, #tpu.memory_space<vmem>>, vector<8x32xf32>
    %29 = arith.mulf %28, %27 : vector<8x32xf32>
    %30 = arith.addf %29, %23 : vector<8x32xf32>
    %cst_20 = arith.constant 0.000000e+00 : f32
    %31 = vector.broadcast %cst_20 : f32 to vector<8x32xf32>
    %32 = tpu.concatenate %30, %23, %24, %31 in 1 : vector<8x32xf32>, vector<8x32xf32>, vector<8x32xf32>, vector<8x32xf32> -> vector<8x128xf32>
    %c0_21 = arith.constant 0 : index
    %c0_22 = arith.constant 0 : index
    %33 = vector.load %arg9[%c0_21, %c0_22] : memref<8x128xf32, #tpu.memory_space<vmem>>, vector<8x128xf32>
    tpu.vector_store %arg9[%c0_21, %c0_22], %32 {strides = array<i32>} : memref<8x128xf32, #tpu.memory_space<vmem>>, vector<8x128xf32>,
    return
  }
  func.func @transform_0(%arg0: i32) -> (i32, i32) {
    %c0_i32 = arith.constant 0 : i32
    %c0_i32_0 = arith.constant 0 : i32
    return %arg0, %c0_i32 : i32, i32
  }
  func.func @transform_1(%arg0: i32) -> (i32, i32) {
    %c0_i32 = arith.constant 0 : i32
    %c0_i32_0 = arith.constant 0 : i32
    %c0_i32_1 = arith.constant 0 : i32
    return %c0_i32, %c0_i32_0 : i32, i32
  }
  func.func @transform_2(%arg0: i32) -> (i32, i32) {
    %c0_i32 = arith.constant 0 : i32
    %c0_i32_0 = arith.constant 0 : i32
    %c0_i32_1 = arith.constant 0 : i32
    return %c0_i32, %c0_i32_0 : i32, i32
  }
  func.func @transform_3(%arg0: i32) -> (i32, i32) {
    %c0_i32 = arith.constant 0 : i32
    %c0_i32_0 = arith.constant 0 : i32
    %c0_i32_1 = arith.constant 0 : i32
    return %c0_i32, %c0_i32_0 : i32, i32
  }
  func.func @transform_4(%arg0: i32) -> (i32, i32) {
    %c0_i32 = arith.constant 0 : i32
    %c0_i32_0 = arith.constant 0 : i32
    %c0_i32_1 = arith.constant 0 : i32
    return %c0_i32, %c0_i32_0 : i32, i32
  }
  func.func @transform_5(%arg0: i32) -> (i32, i32) {
    %c0_i32 = arith.constant 0 : i32
    %c0_i32_0 = arith.constant 0 : i32
    %c0_i32_1 = arith.constant 0 : i32
    return %c0_i32, %c0_i32_0 : i32, i32
  }
  func.func @transform_6(%arg0: i32) -> (i32, i32) {
    %c0_i32 = arith.constant 0 : i32
    %c0_i32_0 = arith.constant 0 : i32
    %c0_i32_1 = arith.constant 0 : i32
    return %c0_i32, %c0_i32_0 : i32, i32
  }
  func.func @transform_7(%arg0: i32) -> (i32, i32) {
    %c0_i32 = arith.constant 0 : i32
    %c0_i32_0 = arith.constant 0 : i32
    return %arg0, %c0_i32 : i32, i32
  }
  func.func @transform_8(%arg0: i32) -> (i32, i32) {
    %c0_i32 = arith.constant 0 : i32
    %c0_i32_0 = arith.constant 0 : i32
    return %arg0, %c0_i32 : i32, i32
  }
}

</mosaic_0001>

<llo_original>
// kernel: tpu_custom_call.1
$region0: #{tpu_custom_call.1}
  #allocation0 [shape = 'u32[]', space=smem, size = 0x4, offset = 0x4, fixed_abs, tag = 'smem constant byte address 0x4 - core index']
  #allocation1 [shape = 'u32[72,128]{1,0:T(1,128)}', space=vmem, size = 0x9000, scoped, tag = 'internal scratch']
  %s0 = inlined_call_operand.hbm [shape: f32[8,128], index: 0, kind: input, shape index: {}]
  %s1 = inlined_call_operand.hbm [shape: bf16[128,128], index: 1, kind: input, shape index: {}]
  %s2 = inlined_call_operand.vmem [shape: f32[1,128], index: 2, kind: input, shape index: {}]
  %s3 = inlined_call_operand.hbm [shape: bf16[128,128], index: 3, kind: input, shape index: {}]
  %s4 = inlined_call_operand.vmem [shape: f32[1,128], index: 4, kind: input, shape index: {}]
  %s5 = inlined_call_operand.hbm [shape: bf16[128,128], index: 5, kind: input, shape index: {}]
  %s6 = inlined_call_operand.vmem [shape: f32[1,128], index: 6, kind: input, shape index: {}]
  %s7 = inlined_call_operand.hbm [shape: f32[8,32], index: 7, kind: input, shape index: {}]
  %s8 = inlined_call_operand.hbm [shape: f32[8,128], index: 8, kind: output, shape index: {}]
  %s9 = sld [smem:[#allocation0]]
  $region62: #{tpu_custom_call.1} parent=0
    _
  %s11 = ssub.s32 1, %s9
  %s12 = scalar_select 0, %s11, %s9
  $region1: #{tpu_custom_call.1} parent=0
    #allocation2 [shape = 'u8[4096]{0}', space=vmem, size = 0x1000, scoped, tag = 'input window, operand 0, single buffered']
    #allocation3 [shape = 's32[1]{0}', space=sflag, size = 0x4, scoped, tag = 'scoped memory for tpu_custom_call.1']
    #allocation4 [shape = 's32[1]{0}', space=sflag, size = 0x4, scoped, tag = 'scoped memory for tpu_custom_call.1']
    #allocation5 [shape = 'u8[32768]{0}', space=vmem, size = 0x8000, scoped, tag = 'input window, operand 1, single buffered']
    #allocation6 [shape = 's32[1]{0}', space=sflag, size = 0x4, scoped, tag = 'scoped memory for tpu_custom_call.1']
    #allocation7 [shape = 'u8[32768]{0}', space=vmem, size = 0x8000, scoped, tag = 'input window, operand 3, single buffered']
    #allocation8 [shape = 'u8[32768]{0}', space=vmem, size = 0x8000, scoped, tag = 'input window, operand 5, single buffered']
    #allocation9 [shape = 's32[1]{0}', space=sflag, size = 0x4, scoped, tag = 'scoped memory for tpu_custom_call.1']
    #allocation10 [shape = 'u8[4096]{0}', space=vmem, size = 0x1000, scoped, tag = 'input window, operand 7, single buffered']
    #allocation11 [shape = 'u8[4096]{0}', space=vmem, size = 0x1000, scoped, tag = 'output window, operand 0, single buffered']
    %13 = vsyncpa [#allocation3], 0
    %14 = vsyncpa [#allocation6], 0
    %15 = vsyncpa [#allocation9], 0
    %16 = vsyncpa [#allocation4], 0
    // Predicated region
    $region2: #{tpu_custom_call.1} parent=1 // pred_check
      _
    $region3: #{tpu_custom_call.1} parent=1 // pred_check_branch
      %18 = sbr.rel (0) target = $region5
    $region4: #{tpu_custom_call.1} parent=1 // pred_region
      %20 = vsyncadd [#allocation3], 0
      %s22 = sshll.u32 %s0, 4
      %s23 = int_to_ptr.hbm [resolvable:$true] %s22
      %s24 = sshll.u32 [#allocation2], 4
      %s25 = int_to_ptr.vmem [resolvable:$true] %s24
      %27 = dma.hbm_to_vmem [thread:$0]  %s23, 128, %s25, [#allocation3]
    $region5: #{tpu_custom_call.1} parent=1 // pred_fallthru
      _
    // Predicated region
    $region6: #{tpu_custom_call.1} parent=1 // pred_check
      _
    $region7: #{tpu_custom_call.1} parent=1 // pred_check_branch
      %29 = sbr.rel (0) target = $region9
    $region8: #{tpu_custom_call.1} parent=1 // pred_region
      %31 = vsyncadd [#allocation6], 0
      %s32 = sshll.u32 %s1, 4
      %s33 = int_to_ptr.hbm [resolvable:$true] %s32
      %s34 = sshll.u32 [#allocation5], 4
      %s35 = int_to_ptr.vmem [resolvable:$true] %s34
      %40 = dma.hbm_to_vmem [thread:$0]  %s33, 1024, %s35, [#allocation6], 64, 64, 4
    $region9: #{tpu_custom_call.1} parent=1 // pred_fallthru
      _
    // Predicated region
    $region10: #{tpu_custom_call.1} parent=1 // pred_check
      _
    $region11: #{tpu_custom_call.1} parent=1 // pred_check_branch
      %42 = sbr.rel (0) target = $region13
    $region12: #{tpu_custom_call.1} parent=1 // pred_region
      _
    $region13: #{tpu_custom_call.1} parent=1 // pred_fallthru
      _
    // Predicated region
    $region14: #{tpu_custom_call.1} parent=1 // pred_check
      _
    $region15: #{tpu_custom_call.1} parent=1 // pred_check_branch
      %44 = sbr.rel (0) target = $region17
    $region16: #{tpu_custom_call.1} parent=1 // pred_region
      %46 = vsyncadd [#allocation6], 0
      %s47 = sshll.u32 %s3, 4
      %s48 = int_to_ptr.hbm [resolvable:$true] %s47
      %s49 = sshll.u32 [#allocation7], 4
      %s50 = int_to_ptr.vmem [resolvable:$true] %s49
      %55 = dma.hbm_to_vmem [thread:$0]  %s48, 1024, %s50, [#allocation6], 64, 64, 4
    $region17: #{tpu_custom_call.1} parent=1 // pred_fallthru
      _
    // Predicated region
    $region18: #{tpu_custom_call.1} parent=1 // pred_check
      _
    $region19: #{tpu_custom_call.1} parent=1 // pred_check_branch
      %57 = sbr.rel (0) target = $region21
    $region20: #{tpu_custom_call.1} parent=1 // pred_region
      _
    $region21: #{tpu_custom_call.1} parent=1 // pred_fallthru
      _
    // Predicated region
    $region22: #{tpu_custom_call.1} parent=1 // pred_check
      _
    $region23: #{tpu_custom_call.1} parent=1 // pred_check_branch
      %59 = sbr.rel (0) target = $region25
    $region24: #{tpu_custom_call.1} parent=1 // pred_region
      %61 = vsyncadd [#allocation9], 0
      %s62 = sshll.u32 %s5, 4
      %s63 = int_to_ptr.hbm [resolvable:$true] %s62
      %s64 = sshll.u32 [#allocation8], 4
      %s65 = int_to_ptr.vmem [resolvable:$true] %s64
      %70 = dma.hbm_to_vmem [thread:$0]  %s63, 1024, %s65, [#allocation9], 64, 64, 4
    $region25: #{tpu_custom_call.1} parent=1 // pred_fallthru
      _
    // Predicated region
    $region26: #{tpu_custom_call.1} parent=1 // pred_check
      _
    $region27: #{tpu_custom_call.1} parent=1 // pred_check_branch
      %72 = sbr.rel (0) target = $region29
    $region28: #{tpu_custom_call.1} parent=1 // pred_region
      _
    $region29: #{tpu_custom_call.1} parent=1 // pred_fallthru
      _
    // Predicated region
    $region30: #{tpu_custom_call.1} parent=1 // pred_check
      _
    $region31: #{tpu_custom_call.1} parent=1 // pred_check_branch
      %74 = sbr.rel (0) target = $region33
    $region32: #{tpu_custom_call.1} parent=1 // pred_region
      %76 = vsyncadd [#allocation9], 0
      %s78 = sshll.u32 %s7, 4
      %s79 = int_to_ptr.hbm [resolvable:$true] %s78
      %s80 = sshll.u32 [#allocation10], 4
      %s81 = int_to_ptr.vmem [resolvable:$true] %s80
      %83 = dma.hbm_to_vmem [thread:$0]  %s79, 128, %s81, [#allocation9]
    $region33: #{tpu_custom_call.1} parent=1 // pred_fallthru
      _
    // Predicated region
    $region34: #{tpu_custom_call.1} parent=1 // pred_check
      _
    $region35: #{tpu_custom_call.1} parent=1 // pred_check_branch
      %85 = sbr.rel (0) target = $region37
    $region36: #{tpu_custom_call.1} parent=1 // pred_region
      %87 = dma.done [#allocation3], 128
    $region37: #{tpu_custom_call.1} parent=1 // pred_fallthru
      _
    // Predicated region
    $region38: #{tpu_custom_call.1} parent=1 // pred_check
      _
    $region39: #{tpu_custom_call.1} parent=1 // pred_check_branch
      %89 = sbr.rel (0) target = $region41
    $region40: #{tpu_custom_call.1} parent=1 // pred_region
      %91 = dma.done [#allocation6], 1024
    $region41: #{tpu_custom_call.1} parent=1 // pred_fallthru
      _
    // Predicated region
    $region42: #{tpu_custom_call.1} parent=1 // pred_check
      _
    $region43: #{tpu_custom_call.1} parent=1 // pred_check_branch
      %93 = sbr.rel (0) target = $region45
    $region44: #{tpu_custom_call.1} parent=1 // pred_region
      %95 = dma.done [#allocation6], 1024
    $region45: #{tpu_custom_call.1} parent=1 // pred_fallthru
      _
    // Predicated region
    $region46: #{tpu_custom_call.1} parent=1 // pred_check
      _
    $region47: #{tpu_custom_call.1} parent=1 // pred_check_branch
      %97 = sbr.rel (0) target = $region49
    $region48: #{tpu_custom_call.1} parent=1 // pred_region
      %99 = dma.done [#allocation9], 1024
    $region49: #{tpu_custom_call.1} parent=1 // pred_fallthru
      _
    // Predicated region
    $region50: #{tpu_custom_call.1} parent=1 // pred_check
      _
    $region51: #{tpu_custom_call.1} parent=1 // pred_check_branch
      %101 = sbr.rel (0) target = $region53
    $region52: #{tpu_custom_call.1} parent=1 // pred_region
      %103 = dma.done [#allocation9], 128
    $region53: #{tpu_custom_call.1} parent=1 // pred_fallthru
      _
    %v104 = vld [vmem:[#allocation2] sm:$0xff]
    %v105 = vpack.c.bf16 %v104, %v104
    %v106 = vld [vmem:[#allocation5] sm:$0xf]
    %v107 = vld [vmem:[#allocation5 + $0x4] sm:$0xf]
    %v108 = vld [vmem:[#allocation5 + $0x8] sm:$0xf]
    %v109 = vld [vmem:[#allocation5 + $0xc] sm:$0xf]
    %v110 = vld [vmem:[#allocation5 + $0x10] sm:$0xf]
    %v111 = vld [vmem:[#allocation5 + $0x14] sm:$0xf]
    %v112 = vld [vmem:[#allocation5 + $0x18] sm:$0xf]
    %v113 = vld [vmem:[#allocation5 + $0x1c] sm:$0xf]
    %v114 = vld [vmem:[#allocation5 + $0x20] sm:$0xf]
    %v115 = vld [vmem:[#allocation5 + $0x24] sm:$0xf]
    %v116 = vld [vmem:[#allocation5 + $0x28] sm:$0xf]
    %v117 = vld [vmem:[#allocation5 + $0x2c] sm:$0xf]
    %v118 = vld [vmem:[#allocation5 + $0x30] sm:$0xf]
    %v119 = vld [vmem:[#allocation5 + $0x34] sm:$0xf]
    %v120 = vld [vmem:[#allocation5 + $0x38] sm:$0xf]
    %v121 = vld [vmem:[#allocation5 + $0x3c] sm:$0xf]
    %v122 = vld [vmem:[%s2] sm:$0x1]
    %v124 = vperm.slane %v122, 0
    %v142 = vunpack.c.l.b16 %v106
    %v143 = vunpack.c.l.b16 %v107
    %v144 = vunpack.c.l.b16 %v108
    %v145 = vunpack.c.l.b16 %v109
    %v146 = vunpack.c.l.b16 %v110
    %v147 = vunpack.c.l.b16 %v111
    %v148 = vunpack.c.l.b16 %v112
    %v149 = vunpack.c.l.b16 %v113
    %v150 = vunpack.c.l.b16 %v114
    %v151 = vunpack.c.l.b16 %v115
    %v152 = vunpack.c.l.b16 %v116
    %v153 = vunpack.c.l.b16 %v117
    %v154 = vunpack.c.l.b16 %v118
    %v155 = vunpack.c.l.b16 %v119
    %v156 = vunpack.c.l.b16 %v120
    %v157 = vunpack.c.l.b16 %v121
    %v158 = vpack.c.b16 %v143, %v142
    %v159 = vpack.c.b16 %v145, %v144
    %v160 = vpack.c.b16 %v147, %v146
    %v161 = vpack.c.b16 %v149, %v148
    %v162 = vpack.c.b16 %v151, %v150
    %v163 = vpack.c.b16 %v153, %v152
    %v164 = vpack.c.b16 %v155, %v154
    %v165 = vpack.c.b16 %v157, %v156
    %174 = vmatpush.bf16.msra.mxu0 %v165
    %175 = vmatpush.bf16.msra.mxu0 %v164
    %176 = vmatpush.bf16.msra.mxu0 %v163
    %177 = vmatpush.bf16.msra.mxu0 %v162
    %178 = vmatpush.bf16.msra.mxu0 %v161
    %179 = vmatpush.bf16.msra.mxu0 %v160
    %180 = vmatpush.bf16.msra.mxu0 %v159
    %181 = vmatpush.bf16.msra.mxu0 %v158
    %182 = vmatmul.bf16.gmra.mxu0 %v105
    %v183 = vpop.f32.mrf.mxu0
    %v184 = vadd.f32 %v124, %v183
    %v185 = vpop.f32.mrf.mxu0
    %186 = vdwg.mxu0
    %v187 = vmax.f32 %v184, 0.0
    %v188 = vpack.c.bf16 %v187, %v187
    %v189 = vld [vmem:[#allocation7] sm:$0xf]
    %v190 = vld [vmem:[#allocation7 + $0x4] sm:$0xf]
    %v191 = vld [vmem:[#allocation7 + $0x8] sm:$0xf]
    %v192 = vld [vmem:[#allocation7 + $0xc] sm:$0xf]
    %v193 = vld [vmem:[#allocation7 + $0x10] sm:$0xf]
    %v194 = vld [vmem:[#allocation7 + $0x14] sm:$0xf]
    %v195 = vld [vmem:[#allocation7 + $0x18] sm:$0xf]
    %v196 = vld [vmem:[#allocation7 + $0x1c] sm:$0xf]
    %v197 = vld [vmem:[#allocation7 + $0x20] sm:$0xf]
    %v198 = vld [vmem:[#allocation7 + $0x24] sm:$0xf]
    %v199 = vld [vmem:[#allocation7 + $0x28] sm:$0xf]
    %v200 = vld [vmem:[#allocation7 + $0x2c] sm:$0xf]
    %v201 = vld [vmem:[#allocation7 + $0x30] sm:$0xf]
    %v202 = vld [vmem:[#allocation7 + $0x34] sm:$0xf]
    %v203 = vld [vmem:[#allocation7 + $0x38] sm:$0xf]
    %v204 = vld [vmem:[#allocation7 + $0x3c] sm:$0xf]
    %v205 = vld [vmem:[%s4] sm:$0x1]
    %v207 = vperm.slane %v205, 0
    %v225 = vunpack.c.l.b16 %v189
    %v226 = vunpack.c.l.b16 %v190
    %v227 = vunpack.c.l.b16 %v191
    %v228 = vunpack.c.l.b16 %v192
    %v229 = vunpack.c.l.b16 %v193
    %v230 = vunpack.c.l.b16 %v194
    %v231 = vunpack.c.l.b16 %v195
    %v232 = vunpack.c.l.b16 %v196
    %v233 = vunpack.c.l.b16 %v197
    %v234 = vunpack.c.l.b16 %v198
    %v235 = vunpack.c.l.b16 %v199
    %v236 = vunpack.c.l.b16 %v200
    %v237 = vunpack.c.l.b16 %v201
    %v238 = vunpack.c.l.b16 %v202
    %v239 = vunpack.c.l.b16 %v203
    %v240 = vunpack.c.l.b16 %v204
    %v241 = vpack.c.b16 %v226, %v225
    %v242 = vpack.c.b16 %v228, %v227
    %v243 = vpack.c.b16 %v230, %v229
    %v244 = vpack.c.b16 %v232, %v231
    %v245 = vpack.c.b16 %v234, %v233
    %v246 = vpack.c.b16 %v236, %v235
    %v247 = vpack.c.b16 %v238, %v237
    %v248 = vpack.c.b16 %v240, %v239
    %257 = vmatpush.bf16.msra.mxu0 %v248
    %258 = vmatpush.bf16.msra.mxu0 %v247
    %259 = vmatpush.bf16.msra.mxu0 %v246
    %260 = vmatpush.bf16.msra.mxu0 %v245
    %261 = vmatpush.bf16.msra.mxu0 %v244
    %262 = vmatpush.bf16.msra.mxu0 %v243
    %263 = vmatpush.bf16.msra.mxu0 %v242
    %264 = vmatpush.bf16.msra.mxu0 %v241
    %265 = vmatmul.bf16.gmra.mxu0 %v188
    %v266 = vpop.f32.mrf.mxu0
    %v267 = vadd.f32 %v207, %v266
    %v268 = vpop.f32.mrf.mxu0
    %269 = vdwg.mxu0
    %v270 = vmax.f32 %v267, 0.0
    %v271 = vpack.c.bf16 %v270, %v270
    %v272 = vld [vmem:[#allocation8] sm:$0xf]
    %v273 = vld [vmem:[#allocation8 + $0x4] sm:$0xf]
    %v274 = vld [vmem:[#allocation8 + $0x8] sm:$0xf]
    %v275 = vld [vmem:[#allocation8 + $0xc] sm:$0xf]
    %v276 = vld [vmem:[#allocation8 + $0x10] sm:$0xf]
    %v277 = vld [vmem:[#allocation8 + $0x14] sm:$0xf]
    %v278 = vld [vmem:[#allocation8 + $0x18] sm:$0xf]
    %v279 = vld [vmem:[#allocation8 + $0x1c] sm:$0xf]
    %v280 = vld [vmem:[#allocation8 + $0x20] sm:$0xf]
    %v281 = vld [vmem:[#allocation8 + $0x24] sm:$0xf]
    %v282 = vld [vmem:[#allocation8 + $0x28] sm:$0xf]
    %v283 = vld [vmem:[#allocation8 + $0x2c] sm:$0xf]
    %v284 = vld [vmem:[#allocation8 + $0x30] sm:$0xf]
    %v285 = vld [vmem:[#allocation8 + $0x34] sm:$0xf]
    %v286 = vld [vmem:[#allocation8 + $0x38] sm:$0xf]
    %v287 = vld [vmem:[#allocation8 + $0x3c] sm:$0xf]
    %v288 = vld [vmem:[%s6] sm:$0x1]
    %v290 = vperm.slane %v288, 0
    %v308 = vunpack.c.l.b16 %v272
    %v309 = vunpack.c.l.b16 %v273
    %v310 = vunpack.c.l.b16 %v274
    %v311 = vunpack.c.l.b16 %v275
    %v312 = vunpack.c.l.b16 %v276
    %v313 = vunpack.c.l.b16 %v277
    %v314 = vunpack.c.l.b16 %v278
    %v315 = vunpack.c.l.b16 %v279
    %v316 = vunpack.c.l.b16 %v280
    %v317 = vunpack.c.l.b16 %v281
    %v318 = vunpack.c.l.b16 %v282
    %v319 = vunpack.c.l.b16 %v283
    %v320 = vunpack.c.l.b16 %v284
    %v321 = vunpack.c.l.b16 %v285
    %v322 = vunpack.c.l.b16 %v286
    %v323 = vunpack.c.l.b16 %v287
    %v324 = vpack.c.b16 %v309, %v308
    %v325 = vpack.c.b16 %v311, %v310
    %v326 = vpack.c.b16 %v313, %v312
    %v327 = vpack.c.b16 %v315, %v314
    %v328 = vpack.c.b16 %v317, %v316
    %v329 = vpack.c.b16 %v319, %v318
    %v330 = vpack.c.b16 %v321, %v320
    %v331 = vpack.c.b16 %v323, %v322
    %340 = vmatpush.bf16.msra.mxu0 %v331
    %341 = vmatpush.bf16.msra.mxu0 %v330
    %342 = vmatpush.bf16.msra.mxu0 %v329
    %343 = vmatpush.bf16.msra.mxu0 %v328
    %344 = vmatpush.bf16.msra.mxu0 %v327
    %345 = vmatpush.bf16.msra.mxu0 %v326
    %346 = vmatpush.bf16.msra.mxu0 %v325
    %347 = vmatpush.bf16.msra.mxu0 %v324
    %348 = vmatmul.bf16.gmra.mxu0 %v271
    %v349 = vpop.f32.mrf.mxu0
    %v350 = vadd.f32 %v290, %v349
    %v351 = vpop.f32.mrf.mxu0
    %352 = vdwg.mxu0
    %v353 = vmul.f32 %v350, 0.5
    %v354 = vmul.f32 %v353, 1.442695
    %v355 = vpow.pop %v354
    %v356 = vld [vmem:[#allocation10] sm:$0xff]
    %358 = vrot.lane.b32.xlu0 %v355, 96
    %v359 = vpop.permute.xlu0 %358
    %v361 = vmul.f32 %v356, %v359
    %v362 = vadd.f32 %v361, %v350
    %364 = vrot.lane.b32.xlu0 %v350, 32
    %v365 = vpop.permute.xlu0 %364
    %vm367 = vcmask 261120
    %v368 = vsel %vm367, %v362, %v365
    %vm369 = vcmask 523264
    %v370 = vsel %vm369, %v368, %v365
    %vm371 = vcmask 785408
    %v372 = vsel %vm371, %v370, 0.0
    %373 = vst [vmem:[#allocation11] sm:$0xff] %v372
    // Predicated region
    $region54: #{tpu_custom_call.1} parent=1 // pred_check
      _
    $region55: #{tpu_custom_call.1} parent=1 // pred_check_branch
      %375 = sbr.rel (0) target = $region57
    $region56: #{tpu_custom_call.1} parent=1 // pred_region
      %377 = vsyncadd [#allocation4], 0
      %s379 = sshll.u32 [#allocation11], 4
      %s380 = int_to_ptr.vmem [resolvable:$true] %s379
      %s381 = sshll.u32 %s8, 4
      %s382 = int_to_ptr.hbm [resolvable:$true] %s381
      %384 = dma.vmem_to_hbm [thread:$0]  %s380, 128, %s382, [#allocation4]
    $region57: #{tpu_custom_call.1} parent=1 // pred_fallthru
      _
    // Predicated region
    $region58: #{tpu_custom_call.1} parent=1 // pred_check
      _
    $region59: #{tpu_custom_call.1} parent=1 // pred_check_branch
      %386 = sbr.rel (0) target = $region61
    $region60: #{tpu_custom_call.1} parent=1 // pred_region
      %388 = dma.done [#allocation4], 128
    $region61: #{tpu_custom_call.1} parent=1 // pred_fallthru
      _
    %389 = vsyncpa [#allocation3], 1
    %390 = vsyncpa [#allocation6], 1
    %391 = vsyncpa [#allocation9], 1
    %392 = vsyncpa [#allocation4], 1

</llo_original>
